<compile_context>
chip_gen: v5e
topology: v5e:2x2
jax: 0.10.0
libtpu: 0.0.40
codegen_flags: <defaults>
</compile_context>

<pallas_src>
import functools

import jax
import jax.numpy as jnp
from jax import lax
from jax.experimental import pallas as pl
from jax.experimental.pallas import tpu as pltpu


def _round_up(x, m):
    return (x + m - 1) // m * m


def _mlm_matmul_kernel(x_ref, gamma_ref, beta_ref, w_ref, b_ref,
                       logits_ref, lse_ref,
                       y_sc, m_sc, l_sc, *, eps, apply_softmax):
    # x_ref: (TR, H); gamma/beta: (1, H); w: (H, TV); b: (1, TV)
    # logits_ref: (TR, TV); lse_ref: (TR, 1)
    # y_sc: (TR, H) in w.dtype; m_sc/l_sc: (TR, 1) f32
    j = pl.program_id(1)
    nj = pl.num_programs(1)

    # LayerNorm once per row tile (vocab axis is the inner, sequential grid axis).
    @pl.when(j == 0)
    def _():
        x = x_ref[...].astype(jnp.float32)
        mu = jnp.mean(x, axis=-1, keepdims=True)
        xc = x - mu
        var = jnp.mean(xc * xc, axis=-1, keepdims=True)
        y = (xc * lax.rsqrt(var + eps)) * gamma_ref[...].astype(jnp.float32) \
            + beta_ref[...].astype(jnp.float32)
        y_sc[...] = y.astype(y_sc.dtype)
        if apply_softmax:
            m_sc[...] = jnp.full(m_sc.shape, -jnp.inf, dtype=m_sc.dtype)
            l_sc[...] = jnp.zeros(l_sc.shape, dtype=l_sc.dtype)

    # Linear: (TR, H) @ (H, TV) on the MXU, operands in native dtype, f32 accumulate.
    logits = jnp.dot(y_sc[...], w_ref[...], preferred_element_type=jnp.float32)
    logits = logits + b_ref[...].astype(jnp.float32)
    logits_ref[...] = logits.astype(logits_ref.dtype)

    if apply_softmax:
        # Online LSE across vocab tiles (flash-softmax style running max / sum-exp).
        m_new = jnp.maximum(m_sc[...], jnp.max(logits, axis=-1, keepdims=True))
        l_sc[...] = l_sc[...] * jnp.exp(m_sc[...] - m_new) + jnp.sum(
            jnp.exp(logits - m_new), axis=-1, keepdims=True)
        m_sc[...] = m_new

        @pl.when(j == nj - 1)
        def _():
            lse_ref[...] = m_sc[...] + jnp.log(l_sc[...])
    else:
        @pl.when(j == nj - 1)
        def _():
            lse_ref[...] = jnp.zeros(lse_ref.shape, dtype=lse_ref.dtype)


def _logsoftmax_finalize_kernel(logits_ref, lse_ref, o_ref):
    # out = logits - LSE(row), elementwise, memory-bound.
    o_ref[...] = (logits_ref[...].astype(jnp.float32)
                  - lse_ref[...]).astype(o_ref.dtype)


def masked_language_model(x, gamma, beta, w, b, *, apply_softmax=True,
                          eps=1e-5, row_tile=256, vocab_tile=2048):
    """x: (batch, seq, hidden); gamma/beta: (hidden,); w: (hidden, vocab) = torch W.T; b: (vocab,)."""
    batch, seq, hidden = x.shape
    vocab = w.shape[1]
    rows = batch * seq

    # Clamp tiles to the (aligned) problem size; vocab tile stays a multiple of 128
    # so output stores remain lane-dense.
    row_tile = min(row_tile, _round_up(rows, 8))
    vocab_tile = min(vocab_tile, _round_up(vocab, 128))
    rows_p = _round_up(rows, row_tile)
    vocab_p = _round_up(vocab, vocab_tile)

    x2 = x.reshape(rows, hidden)
    if rows_p != rows:
        x2 = jnp.pad(x2, ((0, rows_p - rows), (0, 0)))
    if vocab_p != vocab:
        w = jnp.pad(w, ((0, 0), (0, vocab_p - vocab)))
        # Padded vocab columns get a huge negative bias so they never influence the
        # online max / sum-exp; they are sliced off at the end.
        b = jnp.pad(b, (0, vocab_p - vocab), constant_values=-1e30)

    gamma2 = gamma.reshape(1, hidden)
    beta2 = beta.reshape(1, hidden)
    b2 = b.reshape(1, vocab_p)

    grid = (rows_p // row_tile, vocab_p // vocab_tile)

    # LN result cached in the weight dtype so bf16 weights use the bf16 MXU path.
    y_dtype = w.dtype

    esize = lambda dt: jnp.dtype(dt).itemsize
    vmem_est = int(
        2 * row_tile * hidden * esize(x2.dtype)        # x tile (double-buffered)
        + 2 * hidden * vocab_tile * esize(w.dtype)     # weight tile (double-buffered)
        + 2 * row_tile * vocab_tile * esize(x2.dtype)  # logits out tile (double-buffered)
        + row_tile * hidden * esize(y_dtype)           # y scratch
        + 4 * row_tile * 4                             # m/l scratch + lse block
        + 2 * hidden * 4 + 2 * vocab_tile * 4)         # gamma/beta/bias blocks
    vmem_limit = min(max(int(vmem_est * 1.5), 32 * 1024 * 1024), 96 * 1024 * 1024)

    kernel = functools.partial(_mlm_matmul_kernel, eps=eps,
                               apply_softmax=apply_softmax)

    logits, lse = pl.pallas_call(
        kernel,
        out_shape=(jax.ShapeDtypeStruct((rows_p, vocab_p), x.dtype),
                   jax.ShapeDtypeStruct((rows_p, 1), jnp.float32)),
        grid_spec=pltpu.PrefetchScalarGridSpec(
            num_scalar_prefetch=0,
            grid=grid,
            in_specs=[
                pl.BlockSpec((row_tile, hidden), lambda i, j: (i, 0)),      # x rows
                pl.BlockSpec((1, hidden), lambda i, j: (0, 0)),             # gamma
                pl.BlockSpec((1, hidden), lambda i, j: (0, 0)),             # beta
                pl.BlockSpec((hidden, vocab_tile), lambda i, j: (0, j)),    # weight tile
                pl.BlockSpec((1, vocab_tile), lambda i, j: (0, j)),         # bias tile
            ],
            out_specs=(
                pl.BlockSpec((row_tile, vocab_tile), lambda i, j: (i, j)),  # logits
                pl.BlockSpec((row_tile, 1), lambda i, j: (i, 0)),           # LSE
            ),
            scratch_shapes=[
                pltpu.VMEM((row_tile, hidden), y_dtype),   # LN output cache
                pltpu.VMEM((row_tile, 1), jnp.float32),    # running max
                pltpu.VMEM((row_tile, 1), jnp.float32),    # running sum-exp
            ]),
        compiler_params=pltpu.CompilerParams(
            dimension_semantics=("parallel", "arbitrary"),
            vmem_limit_bytes=vmem_limit),
    )(x2, gamma2, beta2, w, b2)

    if apply_softmax:
        out = pl.pallas_call(
            _logsoftmax_finalize_kernel,
            out_shape=jax.ShapeDtypeStruct((rows_p, vocab_p), x.dtype),
            grid_spec=pltpu.PrefetchScalarGridSpec(
                num_scalar_prefetch=0,
                grid=grid,
                in_specs=[
                    pl.BlockSpec((row_tile, vocab_tile), lambda i, j: (i, j)),
                    pl.BlockSpec((row_tile, 1), lambda i, j: (i, 0)),
                ],
                out_specs=pl.BlockSpec((row_tile, vocab_tile), lambda i, j: (i, j)),
            ),
            compiler_params=pltpu.CompilerParams(
                dimension_semantics=("parallel", "parallel"),
                vmem_limit_bytes=vmem_limit),
        )(logits, lse)
    else:
        out = logits

    out = out[:rows, :vocab]
    return out.reshape(batch, seq, vocab)


def _reference(x, gamma, beta, w, b, apply_softmax, eps=1e-5):
    mu = jnp.mean(x, axis=-1, keepdims=True)
    var = jnp.mean((x - mu) ** 2, axis=-1, keepdims=True)
    y = (x - mu) / jnp.sqrt(var + eps) * gamma + beta
    logits = y @ w + b
    if apply_softmax:
        return jax.nn.log_softmax(logits, axis=-1)
    return logits


if __name__ == "__main__":
    batch, seq, hidden, vocab = 2, 8, 32, 128

    key = jax.random.PRNGKey(0)
    kx, kg, kb, kw, kbb = jax.random.split(key, 5)

    x = jax.random.normal(kx, (batch, seq, hidden), dtype=jnp.float32)
    gamma = 1.0 + 0.01 * jax.random.normal(kg, (hidden,), dtype=jnp.float32)
    beta = 0.01 * jax.random.normal(kb, (hidden,), dtype=jnp.float32)
    w = 0.02 * jax.random.normal(kw, (hidden, vocab), dtype=jnp.float32)  # = torch weight.T
    b = 0.02 * jax.random.normal(kbb, (vocab,), dtype=jnp.float32)

    # apply_softmax=True path (LayerNorm -> Linear -> LogSoftmax)
    out = masked_language_model(x, gamma, beta, w, b, apply_softmax=True)
    out = jax.block_until_ready(out)
    ref = _reference(x, gamma, beta, w, b, True)
    assert out.shape == (batch, seq, vocab)
    assert jnp.allclose(out, ref, atol=1e-4, rtol=1e-4), "mismatch vs reference (softmax)"

    # apply_softmax=False path (Identity)
    out2 = masked_language_model(x, gamma, beta, w, b, apply_softmax=False)
    out2 = jax.block_until_ready(out2)
    ref2 = _reference(x, gamma, beta, w, b, False)
    assert jnp.allclose(out2, ref2, atol=1e-4, rtol=1e-4), "mismatch vs reference (identity)"

    print("KERNEL_OK")
</pallas_src>

<mosaic_0001>
module attributes {stable_mosaic.version = 11 : i64} {
  func.func @_mlm_matmul_kernel(%arg0: i32, %arg1: i32, %arg2: memref<16x32xf32, #tpu.memory_space<vmem>>, %arg3: memref<1x32xf32, #tpu.memory_space<vmem>>, %arg4: memref<1x32xf32, #tpu.memory_space<vmem>>, %arg5: memref<32x128xf32, #tpu.memory_space<vmem>>, %arg6: memref<1x128xf32, #tpu.memory_space<vmem>>, %arg7: memref<16x128xf32, #tpu.memory_space<vmem>>, %arg8: memref<16x1xf32, #tpu.memory_space<vmem>>, %arg9: memref<16x32xf32, #tpu.memory_space<vmem>>, %arg10: memref<16x1xf32, #tpu.memory_space<vmem>>, %arg11: memref<16x1xf32, #tpu.memory_space<vmem>>) attributes {dimension_semantics = [#tpu.dimension_semantics<parallel>, #tpu.dimension_semantics<arbitrary>], iteration_bounds = array<i64: 1, 1>, scalar_prefetch = 0 : i64, scratch_operands = 3 : i64, tpu.core_type = #tpu.core_type<tc>, window_params = [{transform_indices = @transform_0, window_bounds = array<i64: 16, 32>}, {pipeline_mode = #tpu.pipeline_mode<synchronous>, transform_indices = @transform_1, window_bounds = array<i64: 1, 32>}, {pipeline_mode = #tpu.pipeline_mode<synchronous>, transform_indices = @transform_2, window_bounds = array<i64: 1, 32>}, {transform_indices = @transform_3, window_bounds = array<i64: 32, 128>}, {transform_indices = @transform_4, window_bounds = array<i64: 1, 128>}, {transform_indices = @transform_5, window_bounds = array<i64: 16, 128>}, {transform_indices = @transform_6, window_bounds = array<i64: 16, 1>}]} {
    %c0_i32 = arith.constant 0 : i32
    %0 = arith.cmpi eq, %arg1, %c0_i32 : i32
    %1 = arith.extui %0 : i1 to i32
    %c0_i32_0 = arith.constant 0 : i32
    %2 = arith.cmpi ne, %1, %c0_i32_0 : i32
    scf.if %2 {
      %c0_22 = arith.constant 0 : index
      %c0_23 = arith.constant 0 : index
      %30 = vector.load %arg2[%c0_22, %c0_23] : memref<16x32xf32, #tpu.memory_space<vmem>>, vector<16x32xf32>
      %cst_24 = arith.constant dense<0.000000e+00> : vector<16xf32>
      %31 = vector.multi_reduction <add>, %30, %cst_24 [1] : vector<16x32xf32> to vector<16xf32>
      %32 = vector.shape_cast %31 : vector<16xf32> to vector<16x1xf32>
      %cst_25 = arith.constant 3.200000e+01 : f32
      %33 = vector.broadcast %cst_25 : f32 to vector<16x1xf32>
      %34 = arith.divf %32, %33 : vector<16x1xf32>
      %35 = vector.broadcast %34 : vector<16x1xf32> to vector<16x32xf32>
      %36 = arith.subf %30, %35 : vector<16x32xf32>
      %37 = arith.mulf %36, %36 : vector<16x32xf32>
      %cst_26 = arith.constant dense<0.000000e+00> : vector<16xf32>
      %38 = vector.multi_reduction <add>, %37, %cst_26 [1] : vector<16x32xf32> to vector<16xf32>
      %39 = vector.shape_cast %38 : vector<16xf32> to vector<16x1xf32>
      %cst_27 = arith.constant 3.200000e+01 : f32
      %40 = vector.broadcast %cst_27 : f32 to vector<16x1xf32>
      %41 = arith.divf %39, %40 : vector<16x1xf32>
      %cst_28 = arith.constant 9.99999974E-6 : f32
      %42 = vector.broadcast %cst_28 : f32 to vector<16x1xf32>
      %43 = arith.addf %41, %42 : vector<16x1xf32>
      %44 = math.rsqrt %43 : vector<16x1xf32>
      %45 = vector.broadcast %44 : vector<16x1xf32> to vector<16x32xf32>
      %46 = arith.mulf %36, %45 : vector<16x32xf32>
      %c0_29 = arith.constant 0 : index
      %c0_30 = arith.constant 0 : index
      %47 = vector.load %arg3[%c0_29, %c0_30] : memref<1x32xf32, #tpu.memory_space<vmem>>, vector<1x32xf32>
      %48 = vector.broadcast %47 : vector<1x32xf32> to vector<16x32xf32>
      %49 = arith.mulf %46, %48 : vector<16x32xf32>
      %c0_31 = arith.constant 0 : index
      %c0_32 = arith.constant 0 : index
      %50 = vector.load %arg4[%c0_31, %c0_32] : memref<1x32xf32, #tpu.memory_space<vmem>>, vector<1x32xf32>
      %51 = vector.broadcast %50 : vector<1x32xf32> to vector<16x32xf32>
      %52 = arith.addf %49, %51 : vector<16x32xf32>
      %c0_33 = arith.constant 0 : index
      %c0_34 = arith.constant 0 : index
      %53 = vector.load %arg9[%c0_33, %c0_34] : memref<16x32xf32, #tpu.memory_space<vmem>>, vector<16x32xf32>
      tpu.vector_store %arg9[%c0_33, %c0_34], %52 {strides = array<i32>} : memref<16x32xf32, #tpu.memory_space<vmem>>, vector<16x32xf32>,
      %cst_35 = arith.constant 0xFF800000 : f32
      %54 = vector.broadcast %cst_35 : f32 to vector<16x1xf32>
      %c0_36 = arith.constant 0 : index
      %c0_37 = arith.constant 0 : index
      %55 = vector.load %arg10[%c0_36, %c0_37] : memref<16x1xf32, #tpu.memory_space<vmem>>, vector<16x1xf32>
      tpu.vector_store %arg10[%c0_36, %c0_37], %54 {strides = array<i32>} : memref<16x1xf32, #tpu.memory_space<vmem>>, vector<16x1xf32>,
      %cst_38 = arith.constant 0.000000e+00 : f32
      %56 = vector.broadcast %cst_38 : f32 to vector<16x1xf32>
      %c0_39 = arith.constant 0 : index
      %c0_40 = arith.constant 0 : index
      %57 = vector.load %arg11[%c0_39, %c0_40] : memref<16x1xf32, #tpu.memory_space<vmem>>, vector<16x1xf32>
      tpu.vector_store %arg11[%c0_39, %c0_40], %56 {strides = array<i32>} : memref<16x1xf32, #tpu.memory_space<vmem>>, vector<16x1xf32>,
    } else {
    }
    %c0 = arith.constant 0 : index
    %c0_1 = arith.constant 0 : index
    %3 = vector.load %arg9[%c0, %c0_1] : memref<16x32xf32, #tpu.memory_space<vmem>>, vector<16x32xf32>
    %c0_2 = arith.constant 0 : index
    %c0_3 = arith.constant 0 : index
    %4 = vector.load %arg5[%c0_2, %c0_3] : memref<32x128xf32, #tpu.memory_space<vmem>>, vector<32x128xf32>
    %cst = arith.constant dense<0.000000e+00> : vector<16x128xf32>
    %5 = tpu.matmul %3, %4, %cst {dimension_numbers = #tpu.dot_dimension_numbers<[1], [0], [0], [1], [0, 0, 1, 1], [], []>} : vector<16x32xf32>, vector<32x128xf32>, vector<16x128xf32> -> vector<16x128xf32>
    %c0_4 = arith.constant 0 : index
    %c0_5 = arith.constant 0 : index
    %6 = vector.load %arg6[%c0_4, %c0_5] : memref<1x128xf32, #tpu.memory_space<vmem>>, vector<1x128xf32>
    %7 = vector.broadcast %6 : vector<1x128xf32> to vector<16x128xf32>
    %8 = arith.addf %5, %7 : vector<16x128xf32>
    %c0_6 = arith.constant 0 : index
    %c0_7 = arith.constant 0 : index
    %9 = vector.load %arg7[%c0_6, %c0_7] : memref<16x128xf32, #tpu.memory_space<vmem>>, vector<16x128xf32>
    tpu.vector_store %arg7[%c0_6, %c0_7], %8 {strides = array<i32>} : memref<16x128xf32, #tpu.memory_space<vmem>>, vector<16x128xf32>,
    %c0_8 = arith.constant 0 : index
    %c0_9 = arith.constant 0 : index
    %10 = vector.load %arg10[%c0_8, %c0_9] : memref<16x1xf32, #tpu.memory_space<vmem>>, vector<16x1xf32>
    %cst_10 = arith.constant dense<0xFF800000> : vector<16xf32>
    %11 = vector.multi_reduction <maximumf>, %8, %cst_10 [1] : vector<16x128xf32> to vector<16xf32>
    %12 = vector.shape_cast %11 : vector<16xf32> to vector<16x1xf32>
    %13 = arith.maximumf %10, %12 : vector<16x1xf32>
    %c0_11 = arith.constant 0 : index
    %c0_12 = arith.constant 0 : index
    %14 = vector.load %arg11[%c0_11, %c0_12] : memref<16x1xf32, #tpu.memory_space<vmem>>, vector<16x1xf32>
    %c0_13 = arith.constant 0 : index
    %c0_14 = arith.constant 0 : index
    %15 = vector.load %arg10[%c0_13, %c0_14] : memref<16x1xf32, #tpu.memory_space<vmem>>, vector<16x1xf32>
    %16 = arith.subf %15, %13 : vector<16x1xf32>
    %17 = math.exp %16 : vector<16x1xf32>
    %18 = arith.mulf %14, %17 : vector<16x1xf32>
    %19 = vector.broadcast %13 : vector<16x1xf32> to vector<16x128xf32>
    %20 = arith.subf %8, %19 : vector<16x128xf32>
    %21 = math.exp %20 : vector<16x128xf32>
    %cst_15 = arith.constant dense<0.000000e+00> : vector<16xf32>
    %22 = vector.multi_reduction <add>, %21, %cst_15 [1] : vector<16x128xf32> to vector<16xf32>
    %23 = vector.shape_cast %22 : vector<16xf32> to vector<16x1xf32>
    %24 = arith.addf %18, %23 : vector<16x1xf32>
    %c0_16 = arith.constant 0 : index
    %c0_17 = arith.constant 0 : index
    %25 = vector.load %arg11[%c0_16, %c0_17] : memref<16x1xf32, #tpu.memory_space<vmem>>, vector<16x1xf32>
    tpu.vector_store %arg11[%c0_16, %c0_17], %24 {strides = array<i32>} : memref<16x1xf32, #tpu.memory_space<vmem>>, vector<16x1xf32>,
    %c0_18 = arith.constant 0 : index
    %c0_19 = arith.constant 0 : index
    %26 = vector.load %arg10[%c0_18, %c0_19] : memref<16x1xf32, #tpu.memory_space<vmem>>, vector<16x1xf32>
    tpu.vector_store %arg10[%c0_18, %c0_19], %13 {strides = array<i32>} : memref<16x1xf32, #tpu.memory_space<vmem>>, vector<16x1xf32>,
    %c0_i32_20 = arith.constant 0 : i32
    %27 = arith.cmpi eq, %arg1, %c0_i32_20 : i32
    %28 = arith.extui %27 : i1 to i32
    %c0_i32_21 = arith.constant 0 : i32
    %29 = arith.cmpi ne, %28, %c0_i32_21 : i32
    scf.if %29 {
      %c0_22 = arith.constant 0 : index
      %c0_23 = arith.constant 0 : index
      %30 = vector.load %arg10[%c0_22, %c0_23] : memref<16x1xf32, #tpu.memory_space<vmem>>, vector<16x1xf32>
      %c0_24 = arith.constant 0 : index
      %c0_25 = arith.constant 0 : index
      %31 = vector.load %arg11[%c0_24, %c0_25] : memref<16x1xf32, #tpu.memory_space<vmem>>, vector<16x1xf32>
      %32 = math.log %31 : vector<16x1xf32>
      %33 = arith.addf %30, %32 : vector<16x1xf32>
      %c0_26 = arith.constant 0 : index
      %c0_27 = arith.constant 0 : index
      %34 = vector.load %arg8[%c0_26, %c0_27] : memref<16x1xf32, #tpu.memory_space<vmem>>, vector<16x1xf32>
      tpu.vector_store %arg8[%c0_26, %c0_27], %33 {strides = array<i32>} : memref<16x1xf32, #tpu.memory_space<vmem>>, vector<16x1xf32>,
    } else {
    }
    return
  }
  func.func @transform_0(%arg0: i32, %arg1: i32) -> (i32, i32) {
    %c0_i32 = arith.constant 0 : i32
    %c0_i32_0 = arith.constant 0 : i32
    return %arg0, %c0_i32 : i32, i32
  }
  func.func @transform_1(%arg0: i32, %arg1: i32) -> (i32, i32) {
    %c0_i32 = arith.constant 0 : i32
    %c0_i32_0 = arith.constant 0 : i32
    %c0_i32_1 = arith.constant 0 : i32
    return %c0_i32, %c0_i32_0 : i32, i32
  }
  func.func @transform_2(%arg0: i32, %arg1: i32) -> (i32, i32) {
    %c0_i32 = arith.constant 0 : i32
    %c0_i32_0 = arith.constant 0 : i32
    %c0_i32_1 = arith.constant 0 : i32
    return %c0_i32, %c0_i32_0 : i32, i32
  }
  func.func @transform_3(%arg0: i32, %arg1: i32) -> (i32, i32) {
    %c0_i32 = arith.constant 0 : i32
    %c0_i32_0 = arith.constant 0 : i32
    return %c0_i32, %arg1 : i32, i32
  }
  func.func @transform_4(%arg0: i32, %arg1: i32) -> (i32, i32) {
    %c0_i32 = arith.constant 0 : i32
    %c0_i32_0 = arith.constant 0 : i32
    return %c0_i32, %arg1 : i32, i32
  }
  func.func @transform_5(%arg0: i32, %arg1: i32) -> (i32, i32) {
    %c0_i32 = arith.constant 0 : i32
    return %arg0, %arg1 : i32, i32
  }
  func.func @transform_6(%arg0: i32, %arg1: i32) -> (i32, i32) {
    %c0_i32 = arith.constant 0 : i32
    %c0_i32_0 = arith.constant 0 : i32
    return %arg0, %c0_i32 : i32, i32
  }
}

</mosaic_0001>

<llo_original>
// kernel: tpu_custom_call.1
$region0: #{tpu_custom_call.1}
  #allocation0 [shape = 'u32[]', space=smem, size = 0x4, offset = 0x4, fixed_abs, tag = 'smem constant byte address 0x4 - core index']
  #allocation1 [shape = 'u32[72,128]{1,0:T(1,128)}', space=vmem, size = 0x9000, scoped, tag = 'internal scratch']
  #allocation2 [shape = 'f32[16,32]{1,0:T(8,128)}', space=vmem, size = 0x2000, scoped, tag = 'scratch operand']
  #allocation3 [shape = 'f32[16,1]{1,0:T(8,128)}', space=vmem, size = 0x2000, scoped, tag = 'scratch operand']
  #allocation4 [shape = 'f32[16,1]{1,0:T(8,128)}', space=vmem, size = 0x2000, scoped, tag = 'scratch operand']
  %s0 = inlined_call_operand.hbm [shape: f32[16,32], index: 0, kind: input, shape index: {}]
  %s1 = inlined_call_operand.hbm [shape: f32[1,32], index: 1, kind: input, shape index: {}]
  %s2 = inlined_call_operand.vmem [shape: f32[1,32], index: 2, kind: input, shape index: {}]
  %s3 = inlined_call_operand.hbm [shape: f32[32,128], index: 3, kind: input, shape index: {}]
  %s4 = inlined_call_operand.vmem [shape: f32[1,128], index: 4, kind: input, shape index: {}]
  %s5 = inlined_call_operand.hbm [shape: f32[16,128], index: 5, kind: output, shape index: {0}]
  %s6 = inlined_call_operand.vmem [shape: f32[16,1], index: 6, kind: output, shape index: {1}]
  %7 = xla_tuple %s5, %s6
  %s8 = sld [smem:[#allocation0]]
  $region58: #{tpu_custom_call.1} parent=0
    _
  %s10 = ssub.s32 1, %s8
  %s11 = scalar_select 0, %s10, %s8
  $region1: #{tpu_custom_call.1} parent=0
    #allocation5 [shape = 'u8[8192]{0}', space=vmem, size = 0x2000, scoped, tag = 'input window, operand 0, single buffered']
    #allocation6 [shape = 's32[1]{0}', space=sflag, size = 0x4, scoped, tag = 'scoped memory for tpu_custom_call.1']
    #allocation7 [shape = 's32[1]{0}', space=sflag, size = 0x4, scoped, tag = 'scoped memory for tpu_custom_call.1']
    #allocation8 [shape = 'u8[512]{0}', space=vmem, size = 0x400, scoped, tag = 'input window, operand 1, single buffered']
    #allocation9 [shape = 's32[1]{0}', space=sflag, size = 0x4, scoped, tag = 'scoped memory for tpu_custom_call.1']
    #allocation10 [shape = 'u8[16384]{0}', space=vmem, size = 0x4000, scoped, tag = 'input window, operand 3, single buffered']
    #allocation11 [shape = 'u8[8192]{0}', space=vmem, size = 0x2000, scoped, tag = 'output window, operand 0, single buffered']
    %12 = vsyncpa [#allocation6], 0
    %13 = vsyncpa [#allocation9], 0
    %14 = vsyncpa [#allocation7], 0
    // Predicated region
    $region2: #{tpu_custom_call.1} parent=1 // pred_check
      _
    $region3: #{tpu_custom_call.1} parent=1 // pred_check_branch
      %16 = sbr.rel (0) target = $region5
    $region4: #{tpu_custom_call.1} parent=1 // pred_region
      %18 = vsyncadd [#allocation6], 0
      %s19 = sshll.u32 %s0, 4
      %s20 = int_to_ptr.hbm [resolvable:$true] %s19
      %s21 = sshll.u32 [#allocation5], 4
      %s22 = int_to_ptr.vmem [resolvable:$true] %s21
      %27 = dma.hbm_to_vmem [thread:$0]  %s20, 256, %s22, [#allocation6], 128, 128, 8
    $region5: #{tpu_custom_call.1} parent=1 // pred_fallthru
      _
    // Predicated region
    $region6: #{tpu_custom_call.1} parent=1 // pred_check
      _
    $region7: #{tpu_custom_call.1} parent=1 // pred_check_branch
      %29 = sbr.rel (0) target = $region9
    $region8: #{tpu_custom_call.1} parent=1 // pred_region
      %31 = vsyncadd [#allocation9], 0
      %s33 = sshll.u32 %s1, 4
      %s34 = int_to_ptr.hbm [resolvable:$true] %s33
      %s35 = sshll.u32 [#allocation8], 4
      %s36 = int_to_ptr.vmem [resolvable:$true] %s35
      %38 = dma.hbm_to_vmem [thread:$0]  %s34, 16, %s36, [#allocation9]
    $region9: #{tpu_custom_call.1} parent=1 // pred_fallthru
      _
    // Predicated region
    $region10: #{tpu_custom_call.1} parent=1 // pred_check
      _
    $region11: #{tpu_custom_call.1} parent=1 // pred_check_branch
      %40 = sbr.rel (0) target = $region13
    $region12: #{tpu_custom_call.1} parent=1 // pred_region
      _
    $region13: #{tpu_custom_call.1} parent=1 // pred_fallthru
      _
    // Predicated region
    $region14: #{tpu_custom_call.1} parent=1 // pred_check
      _
    $region15: #{tpu_custom_call.1} parent=1 // pred_check_branch
      %42 = sbr.rel (0) target = $region17
    $region16: #{tpu_custom_call.1} parent=1 // pred_region
      %44 = vsyncadd [#allocation9], 0
      %s45 = sshll.u32 %s3, 4
      %s46 = int_to_ptr.hbm [resolvable:$true] %s45
      %s47 = sshll.u32 [#allocation10], 4
      %s48 = int_to_ptr.vmem [resolvable:$true] %s47
      %53 = dma.hbm_to_vmem [thread:$0]  %s46, 512, %s48, [#allocation9], 128, 128, 8
    $region17: #{tpu_custom_call.1} parent=1 // pred_fallthru
      _
    // Predicated region
    $region18: #{tpu_custom_call.1} parent=1 // pred_check
      _
    $region19: #{tpu_custom_call.1} parent=1 // pred_check_branch
      %55 = sbr.rel (0) target = $region21
    $region20: #{tpu_custom_call.1} parent=1 // pred_region
      _
    $region21: #{tpu_custom_call.1} parent=1 // pred_fallthru
      _
    // Predicated region
    $region22: #{tpu_custom_call.1} parent=1 // pred_check
      _
    $region23: #{tpu_custom_call.1} parent=1 // pred_check_branch
      %57 = sbr.rel (0) target = $region25
    $region24: #{tpu_custom_call.1} parent=1 // pred_region
      %59 = dma.done [#allocation6], 256
    $region25: #{tpu_custom_call.1} parent=1 // pred_fallthru
      _
    // Predicated region
    $region26: #{tpu_custom_call.1} parent=1 // pred_check
      _
    $region27: #{tpu_custom_call.1} parent=1 // pred_check_branch
      %61 = sbr.rel (0) target = $region29
    $region28: #{tpu_custom_call.1} parent=1 // pred_region
      %63 = dma.done [#allocation9], 16
    $region29: #{tpu_custom_call.1} parent=1 // pred_fallthru
      _
    // Predicated region
    $region30: #{tpu_custom_call.1} parent=1 // pred_check
      _
    $region31: #{tpu_custom_call.1} parent=1 // pred_check_branch
      %65 = sbr.rel (0) target = $region33
    $region32: #{tpu_custom_call.1} parent=1 // pred_region
      %67 = dma.done [#allocation9], 512
    $region33: #{tpu_custom_call.1} parent=1 // pred_fallthru
      _
    %p68 = scmp.eq.s32.totalorder 0, 0
    // Predicated region
    $region34: #{tpu_custom_call.1} parent=1 // pred_check
      %p69 = pneg %p68
    $region35: #{tpu_custom_call.1} parent=1 // pred_check_branch
      %71 = sbr.rel (%p69) target = $region37
    $region36: #{tpu_custom_call.1} parent=1 // pred_region
      %v72 = vld [vmem:[#allocation5] sm:$0xff]
      %v73 = vld [vmem:[#allocation5 + $0x8] sm:$0xff]
      %vm74 = vcmask 261120
      %v75 = vsel %vm74, %v72, 0.0
      %76 = vadd.xlane.f32.xlu0 %v75
      %v77 = vpop.xlane.xlu0 %76
      %v78 = vsel %vm74, %v73, 0.0
      %79 = vadd.xlane.f32.xlu0 %v78
      %v80 = vpop.xlane.xlu0 %79
      %v81 = vrcp.pop 32.0
      %v82 = vmul.f32 32.0, %v81
      %v83 = vsub.f32 1.0, %v82
      %v84 = vmul.f32 %v81, %v83
      %v85 = vadd.f32 %v81, %v84
      %vm86 = vweird.f32 %v81
      %v87 = vsel %vm86, %v81, %v85
      %v88 = vmul.f32 %v77, %v87
      %v89 = vmul.f32 %v80, %v87
      %v90 = vsub.f32 %v72, %v88
      %v91 = vsub.f32 %v73, %v89
      %v92 = vmul.f32 %v90, %v90
      %v93 = vmul.f32 %v91, %v91
      %v94 = vsel %vm74, %v92, 0.0
      %95 = vadd.xlane.f32.xlu0 %v94
      %v96 = vpop.xlane.xlu0 %95
      %v97 = vsel %vm74, %v93, 0.0
      %98 = vadd.xlane.f32.xlu0 %v97
      %v99 = vpop.xlane.xlu0 %98
      %v100 = vmul.f32 %v96, %v87
      %v101 = vmul.f32 %v99, %v87
      %v102 = vadd.f32 %v100, 1e-05
      %v103 = vadd.f32 %v101, 1e-05
      %v104 = vrsqrt.pop %v102
      %v105 = vmul.f32 %v104, %v102
      %v106 = vmul.f32 %v105, %v104
      %v107 = vmul.f32 0.5, %v106
      %v108 = vsub.f32 1.5, %v107
      %v109 = vmul.f32 %v104, %v108
      %vm110 = vweird.f32 %v102
      %vm111 = vweird.f32 %v104
      %vm112 = vmor %vm110, %vm111
      %v113 = vsel %vm112, %v104, %v109
      %v114 = vrsqrt.pop %v103
      %v115 = vmul.f32 %v114, %v103
      %v116 = vmul.f32 %v115, %v114
      %v117 = vmul.f32 0.5, %v116
      %v118 = vsub.f32 1.5, %v117
      %v119 = vmul.f32 %v114, %v118
      %vm120 = vweird.f32 %v103
      %vm121 = vweird.f32 %v114
      %vm122 = vmor %vm120, %vm121
      %v123 = vsel %vm122, %v114, %v119
      %v124 = vmul.f32 %v90, %v113
      %v125 = vmul.f32 %v91, %v123
      %v126 = vld [vmem:[#allocation8] sm:$0x1]
      %v128 = vperm.slane %v126, 0
      %v130 = vmul.f32 %v124, %v128
      %v131 = vmul.f32 %v125, %v128
      %v132 = vld [vmem:[%s2] sm:$0x1]
      %v134 = vperm.slane %v132, 0
      %v136 = vadd.f32 %v130, %v134
      %v137 = vadd.f32 %v131, %v134
      %138 = vst.msk [vmem:[#allocation2] sm:$0xff] %vm74, %v136
      %139 = vst.msk [vmem:[#allocation2 + $0x8] sm:$0xff] %vm74, %v137
      %vm140 = vcmask 7168
      %141 = vst.msk [vmem:[#allocation3] sm:$0xff] %vm140, -inf
      %142 = vst.msk [vmem:[#allocation3 + $0x8] sm:$0xff] %vm140, -inf
      %143 = vst.msk [vmem:[#allocation4] sm:$0xff] %vm140, 0.0
      %144 = vst.msk [vmem:[#allocation4 + $0x8] sm:$0xff] %vm140, 0.0
    $region37: #{tpu_custom_call.1} parent=1 // pred_fallthru
      _
    %v145 = vld [vmem:[#allocation2] sm:$0xff]
    %v146 = vld [vmem:[#allocation2 + $0x8] sm:$0xff]
    %v147 = vld [vmem:[#allocation10] sm:$0xff]
    %v148 = vld [vmem:[#allocation10 + $0x8] sm:$0xff]
    %v149 = vld [vmem:[#allocation10 + $0x10] sm:$0xff]
    %v150 = vld [vmem:[#allocation10 + $0x18] sm:$0xff]
    %v151 = vld [vmem:[%s4] sm:$0x1]
    %v153 = vperm.slane %v151, 0
    %vm155 = vcmask 261120
    %v157 = vsel %vm155, %v145, 0
    %v160 = vsel %vm155, %v146, 0
    %162 = vmatpush.msra.mxu0 0.0
    %163 = vmatpush.msra.mxu0 0.0
    %164 = vmatpush.msra.mxu0 0.0
    %165 = vmatpush.msra.mxu0 0.0
    %166 = vmatpush.msra.mxu0 0.0
    %167 = vmatpush.msra.mxu0 0.0
    %168 = vmatpush.msra.mxu0 0.0
    %169 = vmatpush.msra.mxu0 0.0
    %170 = vmatpush.msra.mxu0 0.0
    %171 = vmatpush.msra.mxu0 0.0
    %172 = vmatpush.msra.mxu0 0.0
    %173 = vmatpush.msra.mxu0 0.0
    %174 = vmatpush.msra.mxu0 %v150
    %175 = vmatpush.msra.mxu0 %v149
    %176 = vmatpush.msra.mxu0 %v148
    %177 = vmatpush.msra.mxu0 %v147
    %178 = vmatmul.f32.gmra.mxu0 %v157
    %v179 = vpop.f32.mrf.mxu0
    %v180 = vadd.f32 %v153, %v179
    %181 = vmatmul.f32.gmra.mxu0 %v160
    %v182 = vpop.f32.mrf.mxu0
    %v183 = vadd.f32 %v153, %v182
    %184 = vdwg.mxu0
    %185 = vst [vmem:[#allocation11] sm:$0xff] %v180
    %186 = vst [vmem:[#allocation11 + $0x8] sm:$0xff] %v183
    %v187 = vld [vmem:[#allocation3] sm:$0xff]
    %v188 = vld [vmem:[#allocation3 + $0x8] sm:$0xff]
    %189 = vmax.xlane.f32.xlu0 %v180
    %v190 = vpop.xlane.xlu0 %189
    %191 = vmax.xlane.f32.xlu0 %v183
    %v192 = vpop.xlane.xlu0 %191
    %v193 = vmax.f32 %v187, %v190
    %v194 = vmax.f32 %v188, %v192
    %v195 = vld [vmem:[#allocation4] sm:$0xff]
    %v196 = vld [vmem:[#allocation4 + $0x8] sm:$0xff]
    %v197 = vsub.f32 %v187, %v193
    %v198 = vsub.f32 %v188, %v194
    %v199 = vmul.f32 %v197, 1.442695
    %v200 = vpow.pop %v199
    %v201 = vmul.f32 %v198, 1.442695
    %v202 = vpow.pop %v201
    %v203 = vmul.f32 %v195, %v200
    %v204 = vmul.f32 %v196, %v202
    %206 = vset.pattern.permute.xlu0 0
    %207 = vperm.xlu0 %206, %v193
    %v208 = vpop.permute.xlu0 %207
    %211 = vset.pattern.permute.xlu0 0
    %212 = vperm.xlu0 %211, %v194
    %v213 = vpop.permute.xlu0 %212
    %v215 = vsub.f32 %v180, %v208
    %v216 = vsub.f32 %v183, %v213
    %v217 = vmul.f32 %v215, 1.442695
    %v218 = vpow.pop %v217
    %v219 = vmul.f32 %v216, 1.442695
    %v220 = vpow.pop %v219
    %221 = vadd.xlane.f32.xlu0 %v218
    %v222 = vpop.xlane.xlu0 %221
    %223 = vadd.xlane.f32.xlu0 %v220
    %v224 = vpop.xlane.xlu0 %223
    %v225 = vadd.f32 %v203, %v222
    %v226 = vadd.f32 %v204, %v224
    %vm227 = vcmask 7168
    %228 = vst.msk [vmem:[#allocation4] sm:$0xff] %vm227, %v225
    %229 = vst.msk [vmem:[#allocation4 + $0x8] sm:$0xff] %vm227, %v226
    %230 = vst.msk [vmem:[#allocation3] sm:$0xff] %vm227, %v193
    %231 = vst.msk [vmem:[#allocation3 + $0x8] sm:$0xff] %vm227, %v194
    // Predicated region
    $region38: #{tpu_custom_call.1} parent=1 // pred_check
      %p232 = pneg %p68
    $region39: #{tpu_custom_call.1} parent=1 // pred_check_branch
      %234 = sbr.rel (%p232) target = $region41
    $region40: #{tpu_custom_call.1} parent=1 // pred_region
      %v235 = vld [vmem:[#allocation3] sm:$0xff]
      %v236 = vld [vmem:[#allocation3 + $0x8] sm:$0xff]
      %v237 = vld [vmem:[#allocation4] sm:$0xff]
      %v238 = vld [vmem:[#allocation4 + $0x8] sm:$0xff]
      %v239 = vlog2.pop %v237
      %v240 = vmul.f32 %v239, 0.6931472
      %v241 = vlog2.pop %v238
      %v242 = vmul.f32 %v241, 0.6931472
      %v243 = vadd.f32 %v235, %v240
      %v244 = vadd.f32 %v236, %v242
      %245 = vst.msk [vmem:[%s6] sm:$0xff] %vm227, %v243
      %246 = vst.msk [vmem:[%s6 + $0x8] sm:$0xff] %vm227, %v244
    $region41: #{tpu_custom_call.1} parent=1 // pred_fallthru
      _
    // Predicated region
    $region42: #{tpu_custom_call.1} parent=1 // pred_check
      _
    $region43: #{tpu_custom_call.1} parent=1 // pred_check_branch
      %248 = sbr.rel (0) target = $region45
    $region44: #{tpu_custom_call.1} parent=1 // pred_region
      %250 = vsyncadd [#allocation7], 0
      %s251 = sshll.u32 [#allocation11], 4
      %s252 = int_to_ptr.vmem [resolvable:$true] %s251
      %s253 = sshll.u32 %s5, 4
      %s254 = int_to_ptr.hbm [resolvable:$true] %s253
      %259 = dma.vmem_to_hbm [thread:$0]  %s252, 256, %s254, [#allocation7], 128, 128, 8
    $region45: #{tpu_custom_call.1} parent=1 // pred_fallthru
      _
    // Predicated region
    $region46: #{tpu_custom_call.1} parent=1 // pred_check
      _
    $region47: #{tpu_custom_call.1} parent=1 // pred_check_branch
      %261 = sbr.rel (0) target = $region49
    $region48: #{tpu_custom_call.1} parent=1 // pred_region
      _
    $region49: #{tpu_custom_call.1} parent=1 // pred_fallthru
      _
    // Predicated region
    $region50: #{tpu_custom_call.1} parent=1 // pred_check
      _
    $region51: #{tpu_custom_call.1} parent=1 // pred_check_branch
      %263 = sbr.rel (0) target = $region53
    $region52: #{tpu_custom_call.1} parent=1 // pred_region
      %265 = dma.done [#allocation7], 256
    $region53: #{tpu_custom_call.1} parent=1 // pred_fallthru
      _
    // Predicated region
    $region54: #{tpu_custom_call.1} parent=1 // pred_check
      _
    $region55: #{tpu_custom_call.1} parent=1 // pred_check_branch
      %267 = sbr.rel (0) target = $region57
    $region56: #{tpu_custom_call.1} parent=1 // pred_region
      _
    $region57: #{tpu_custom_call.1} parent=1 // pred_fallthru
      _
    %268 = vsyncpa [#allocation6], 1
    %269 = vsyncpa [#allocation9], 1
    %270 = vsyncpa [#allocation7], 1

</llo_original>
